<compile_context>
chip_gen: v5e
topology: v5e:2x2
jax: 0.10.0
libtpu: 0.0.40
codegen_flags: <defaults>
</compile_context>

<pallas_src>
import jax
import jax.numpy as jnp
from jax import lax
from jax.experimental import pallas as pl
from jax.experimental.pallas import tpu as pltpu

# Problem sizes (small, DKM-like): x1 = context, x2 = embeddings, both (N, C, H, W).
# conv1: 2C -> C, conv2: C -> C.
N, C, H, W = 2, 32, 16, 16


# ---------------- Pallas kernel (one batch element per grid step) ----------------
def _cab_kernel(x1_ref, x2_ref, w1t_ref, b1_ref, w2t_ref, b2_ref, o_ref):
    # AdaptiveAvgPool2d(1) of cat([x1, x2], dim=1): pool each half separately.
    # Lane-reduce with keepdims keeps channels on sublanes as a (C, 1) column.
    p1 = jnp.mean(x1_ref[...], axis=-1, keepdims=True)                   # (C, 1)
    p2 = jnp.mean(x2_ref[...], axis=-1, keepdims=True)                   # (C, 1)
    p_cat = jnp.concatenate([p1, p2], axis=0)                            # (2C, 1) sublane concat

    # conv1/conv2 (1x1) on the pooled column, transposed weights -> no relayouts.
    # Default MXU precision: K <= 64 with O(1) pooled values keeps |err| << 1e-4.
    h = jnp.dot(w1t_ref[...], p_cat,
                preferred_element_type=jnp.float32) + b1_ref[...]        # (C, 1)
    h = jnp.maximum(h, 0.0)                                              # ReLU
    att = jax.nn.sigmoid(
        jnp.dot(w2t_ref[...], h,
                preferred_element_type=jnp.float32) + b2_ref[...])       # (C, 1)

    # res = att * x2 + x1: fresh VMEM reads; att column broadcasts over lanes.
    o_ref[...] = (x2_ref[...] * att + x1_ref[...]).astype(o_ref.dtype)


# ---------------- wrapper ----------------
def cab_forward(x1, x2, params):
    n, c, h, w = x1.shape
    hw = h * w
    x1f = x1.reshape(n, c, hw)
    x2f = x2.reshape(n, c, hw)

    # Transposed weights / column biases so channels ride on sublanes in-kernel.
    w1t = params["w1"].T                    # (C, 2C)
    w2t = params["w2"].T                    # (C, C)
    b1c = params["b1"].reshape(c, 1)
    b2c = params["b2"].reshape(c, 1)

    flops = n * (2 * c * hw                 # pooling (adds + scale)
                 + 2 * c * (2 * c)          # conv1
                 + 2 * c * c                # conv2
                 + 2 * c * hw)              # att * x2 + x1
    bytes_accessed = 4 * (3 * n * c * hw + w1t.size + w2t.size + 2 * c)

    out = pl.pallas_call(
        _cab_kernel,
        out_shape=jax.ShapeDtypeStruct((n, c, hw), jnp.float32),
        grid=(n,),
        in_specs=[
            pl.BlockSpec((None, c, hw), lambda i: (i, 0, 0)),   # x1: one element
            pl.BlockSpec((None, c, hw), lambda i: (i, 0, 0)),   # x2: one element
            pl.BlockSpec((c, 2 * c), lambda i: (0, 0)),         # W1^T (whole)
            pl.BlockSpec((c, 1), lambda i: (0, 0)),             # b1 column
            pl.BlockSpec((c, c), lambda i: (0, 0)),             # W2^T (whole)
            pl.BlockSpec((c, 1), lambda i: (0, 0)),             # b2 column
        ],
        out_specs=pl.BlockSpec((None, c, hw), lambda i: (i, 0, 0)),
        compiler_params=pltpu.CompilerParams(
            dimension_semantics=("parallel",)),                 # batch across TCs on v7x
        cost_estimate=pl.CostEstimate(
            flops=flops, transcendentals=n * c, bytes_accessed=bytes_accessed),
        # NOTE: if the caller discards x1 after this call, add
        # input_output_aliases={0: 0} to reuse its HBM buffer for the output
        # (not done here because the self-test reuses x1/x2 for the reference).
    )(x1f, x2f, w1t, b1c, w2t, b2c)
    return out.reshape(n, c, h, w)


# ---------------- deterministic parameter init (PyTorch-style uniform) ----------------
def init_params(key):
    k1, k2, k3, k4 = jax.random.split(key, 4)

    def unif(k, shape, fan_in):
        bound = 1.0 / (fan_in ** 0.5)
        return jax.random.uniform(k, shape, jnp.float32, -bound, bound)

    return {
        "w1": unif(k1, (2 * C, C), 2 * C),   # conv1: (Cin=2C, Cout=C), 1x1
        "b1": unif(k2, (C,), 2 * C),
        "w2": unif(k3, (C, C), C),           # conv2: (Cin=C, Cout=C), 1x1
        "b2": unif(k4, (C,), C),
    }


# ---------------- pure-JAX reference (sanity check only) ----------------
def ref_cab(x1, x2, p):
    x = jnp.concatenate([x1, x2], axis=1)                         # (N, 2C, H, W)
    pooled = jnp.mean(x, axis=(2, 3), keepdims=True)              # (N, 2C, 1, 1)
    h = jnp.einsum("ncij,cd->ndij", pooled, p["w1"],
                   precision=lax.Precision.HIGHEST) + p["b1"][None, :, None, None]
    h = jnp.maximum(h, 0.0)
    att = jax.nn.sigmoid(
        jnp.einsum("ncij,cd->ndij", h, p["w2"],
                   precision=lax.Precision.HIGHEST) + p["b2"][None, :, None, None])
    return att * x2 + x1


# ---------------- main ----------------
if __name__ == "__main__":
    root = jax.random.PRNGKey(0)
    kp, k1, k2 = jax.random.split(root, 3)
    params = init_params(kp)

    x1 = jax.random.normal(k1, (N, C, H, W), jnp.float32)   # context
    x2 = jax.random.normal(k2, (N, C, H, W), jnp.float32)   # embeddings

    out = cab_forward(x1, x2, params)
    jax.block_until_ready(out)
    assert out.shape == (N, C, H, W)

    ref = ref_cab(x1, x2, params)
    err = float(jnp.max(jnp.abs(out - ref)))
    assert jnp.allclose(out, ref, atol=1e-4, rtol=1e-4), err

    print("KERNEL_OK")
</pallas_src>

<mosaic_0001>
module attributes {stable_mosaic.version = 11 : i64} {
  func.func @_cab_kernel(%arg0: i32, %arg1: memref<1x32x256xf32, #tpu.memory_space<vmem>>, %arg2: memref<1x32x256xf32, #tpu.memory_space<vmem>>, %arg3: memref<32x64xf32, #tpu.memory_space<vmem>>, %arg4: memref<32x1xf32, #tpu.memory_space<vmem>>, %arg5: memref<32x32xf32, #tpu.memory_space<vmem>>, %arg6: memref<32x1xf32, #tpu.memory_space<vmem>>, %arg7: memref<1x32x256xf32, #tpu.memory_space<vmem>>) attributes {dimension_semantics = [#tpu.dimension_semantics<parallel>], iteration_bounds = array<i64: 2>, scalar_prefetch = 0 : i64, scratch_operands = 0 : i64, tpu.core_type = #tpu.core_type<tc>, window_params = [{transform_indices = @transform_0, window_bounds = array<i64: 1, 32, 256>}, {transform_indices = @transform_1, window_bounds = array<i64: 1, 32, 256>}, {pipeline_mode = #tpu.pipeline_mode<synchronous>, transform_indices = @transform_2, window_bounds = array<i64: 32, 64>}, {pipeline_mode = #tpu.pipeline_mode<synchronous>, transform_indices = @transform_3, window_bounds = array<i64: 32, 1>}, {pipeline_mode = #tpu.pipeline_mode<synchronous>, transform_indices = @transform_4, window_bounds = array<i64: 32, 32>}, {pipeline_mode = #tpu.pipeline_mode<synchronous>, transform_indices = @transform_5, window_bounds = array<i64: 32, 1>}, {transform_indices = @transform_6, window_bounds = array<i64: 1, 32, 256>}]} {
    %c0 = arith.constant 0 : index
    %c0_0 = arith.constant 0 : index
    %c0_1 = arith.constant 0 : index
    %0 = vector.load %arg1[%c0, %c0_0, %c0_1] : memref<1x32x256xf32, #tpu.memory_space<vmem>>, vector<1x32x256xf32>
    %1 = vector.shape_cast %0 : vector<1x32x256xf32> to vector<32x256xf32>
    %cst = arith.constant dense<0.000000e+00> : vector<32xf32>
    %2 = vector.multi_reduction <add>, %1, %cst [1] : vector<32x256xf32> to vector<32xf32>
    %3 = vector.shape_cast %2 : vector<32xf32> to vector<32x1xf32>
    %cst_2 = arith.constant 2.560000e+02 : f32
    %4 = vector.broadcast %cst_2 : f32 to vector<32x1xf32>
    %5 = arith.divf %3, %4 : vector<32x1xf32>
    %c0_3 = arith.constant 0 : index
    %c0_4 = arith.constant 0 : index
    %c0_5 = arith.constant 0 : index
    %6 = vector.load %arg2[%c0_3, %c0_4, %c0_5] : memref<1x32x256xf32, #tpu.memory_space<vmem>>, vector<1x32x256xf32>
    %7 = vector.shape_cast %6 : vector<1x32x256xf32> to vector<32x256xf32>
    %cst_6 = arith.constant dense<0.000000e+00> : vector<32xf32>
    %8 = vector.multi_reduction <add>, %7, %cst_6 [1] : vector<32x256xf32> to vector<32xf32>
    %9 = vector.shape_cast %8 : vector<32xf32> to vector<32x1xf32>
    %cst_7 = arith.constant 2.560000e+02 : f32
    %10 = vector.broadcast %cst_7 : f32 to vector<32x1xf32>
    %11 = arith.divf %9, %10 : vector<32x1xf32>
    %12 = tpu.concatenate %5, %11 in 0 : vector<32x1xf32>, vector<32x1xf32> -> vector<64x1xf32>
    %c0_8 = arith.constant 0 : index
    %c0_9 = arith.constant 0 : index
    %13 = vector.load %arg3[%c0_8, %c0_9] : memref<32x64xf32, #tpu.memory_space<vmem>>, vector<32x64xf32>
    %cst_10 = arith.constant dense<0.000000e+00> : vector<32x1xf32>
    %14 = tpu.matmul %13, %12, %cst_10 {dimension_numbers = #tpu.dot_dimension_numbers<[1], [0], [0], [1], [0, 0, 1, 1], [], []>} : vector<32x64xf32>, vector<64x1xf32>, vector<32x1xf32> -> vector<32x1xf32>
    %c0_11 = arith.constant 0 : index
    %c0_12 = arith.constant 0 : index
    %15 = vector.load %arg4[%c0_11, %c0_12] : memref<32x1xf32, #tpu.memory_space<vmem>>, vector<32x1xf32>
    %16 = arith.addf %14, %15 : vector<32x1xf32>
    %cst_13 = arith.constant 0.000000e+00 : f32
    %17 = vector.broadcast %cst_13 : f32 to vector<32x1xf32>
    %18 = arith.maximumf %16, %17 : vector<32x1xf32>
    %c0_14 = arith.constant 0 : index
    %c0_15 = arith.constant 0 : index
    %19 = vector.load %arg5[%c0_14, %c0_15] : memref<32x32xf32, #tpu.memory_space<vmem>>, vector<32x32xf32>
    %cst_16 = arith.constant dense<0.000000e+00> : vector<32x1xf32>
    %20 = tpu.matmul %19, %18, %cst_16 {dimension_numbers = #tpu.dot_dimension_numbers<[1], [0], [0], [1], [0, 0, 1, 1], [], []>} : vector<32x32xf32>, vector<32x1xf32>, vector<32x1xf32> -> vector<32x1xf32>
    %c0_17 = arith.constant 0 : index
    %c0_18 = arith.constant 0 : index
    %21 = vector.load %arg6[%c0_17, %c0_18] : memref<32x1xf32, #tpu.memory_space<vmem>>, vector<32x1xf32>
    %22 = arith.addf %20, %21 : vector<32x1xf32>
    %23 = arith.negf %22 : vector<32x1xf32>
    %24 = math.exp %23 : vector<32x1xf32>
    %cst_19 = arith.constant 1.000000e+00 : f32
    %25 = vector.broadcast %cst_19 : f32 to vector<32x1xf32>
    %26 = arith.addf %25, %24 : vector<32x1xf32>
    %27 = arith.divf %25, %26 : vector<32x1xf32>
    %c0_20 = arith.constant 0 : index
    %c0_21 = arith.constant 0 : index
    %c0_22 = arith.constant 0 : index
    %28 = vector.load %arg2[%c0_20, %c0_21, %c0_22] : memref<1x32x256xf32, #tpu.memory_space<vmem>>, vector<1x32x256xf32>
    %29 = vector.shape_cast %28 : vector<1x32x256xf32> to vector<32x256xf32>
    %30 = vector.broadcast %27 : vector<32x1xf32> to vector<32x256xf32>
    %31 = arith.mulf %29, %30 : vector<32x256xf32>
    %c0_23 = arith.constant 0 : index
    %c0_24 = arith.constant 0 : index
    %c0_25 = arith.constant 0 : index
    %32 = vector.load %arg1[%c0_23, %c0_24, %c0_25] : memref<1x32x256xf32, #tpu.memory_space<vmem>>, vector<1x32x256xf32>
    %33 = vector.shape_cast %32 : vector<1x32x256xf32> to vector<32x256xf32>
    %34 = arith.addf %31, %33 : vector<32x256xf32>
    %c0_26 = arith.constant 0 : index
    %c0_27 = arith.constant 0 : index
    %c0_28 = arith.constant 0 : index
    %35 = vector.load %arg7[%c0_26, %c0_27, %c0_28] : memref<1x32x256xf32, #tpu.memory_space<vmem>>, vector<1x32x256xf32>
    %36 = vector.shape_cast %35 : vector<1x32x256xf32> to vector<32x256xf32>
    %37 = vector.shape_cast %34 : vector<32x256xf32> to vector<1x32x256xf32>
    tpu.vector_store %arg7[%c0_26, %c0_27, %c0_28], %37 {strides = array<i32>} : memref<1x32x256xf32, #tpu.memory_space<vmem>>, vector<1x32x256xf32>,
    return
  }
  func.func @transform_0(%arg0: i32) -> (i32, i32, i32) {
    %c0_i32 = arith.constant 0 : i32
    %c0_i32_0 = arith.constant 0 : i32
    %c0_i32_1 = arith.constant 0 : i32
    return %arg0, %c0_i32, %c0_i32_0 : i32, i32, i32
  }
  func.func @transform_1(%arg0: i32) -> (i32, i32, i32) {
    %c0_i32 = arith.constant 0 : i32
    %c0_i32_0 = arith.constant 0 : i32
    %c0_i32_1 = arith.constant 0 : i32
    return %arg0, %c0_i32, %c0_i32_0 : i32, i32, i32
  }
  func.func @transform_2(%arg0: i32) -> (i32, i32) {
    %c0_i32 = arith.constant 0 : i32
    %c0_i32_0 = arith.constant 0 : i32
    %c0_i32_1 = arith.constant 0 : i32
    return %c0_i32, %c0_i32_0 : i32, i32
  }
  func.func @transform_3(%arg0: i32) -> (i32, i32) {
    %c0_i32 = arith.constant 0 : i32
    %c0_i32_0 = arith.constant 0 : i32
    %c0_i32_1 = arith.constant 0 : i32
    return %c0_i32, %c0_i32_0 : i32, i32
  }
  func.func @transform_4(%arg0: i32) -> (i32, i32) {
    %c0_i32 = arith.constant 0 : i32
    %c0_i32_0 = arith.constant 0 : i32
    %c0_i32_1 = arith.constant 0 : i32
    return %c0_i32, %c0_i32_0 : i32, i32
  }
  func.func @transform_5(%arg0: i32) -> (i32, i32) {
    %c0_i32 = arith.constant 0 : i32
    %c0_i32_0 = arith.constant 0 : i32
    %c0_i32_1 = arith.constant 0 : i32
    return %c0_i32, %c0_i32_0 : i32, i32
  }
  func.func @transform_6(%arg0: i32) -> (i32, i32, i32) {
    %c0_i32 = arith.constant 0 : i32
    %c0_i32_0 = arith.constant 0 : i32
    %c0_i32_1 = arith.constant 0 : i32
    return %arg0, %c0_i32, %c0_i32_0 : i32, i32, i32
  }
}

</mosaic_0001>

<llo_original>
// kernel: tpu_custom_call.1
$region0: #{tpu_custom_call.1}
  #allocation0 [shape = 'u32[]', space=smem, size = 0x4, offset = 0x4, fixed_abs, tag = 'smem constant byte address 0x4 - core index']
  #allocation1 [shape = 'u32[72,128]{1,0:T(1,128)}', space=vmem, size = 0x9000, scoped, tag = 'internal scratch']
  %s0 = inlined_call_operand.hbm [shape: f32[2,32,256], index: 0, kind: input, shape index: {}]
  %s1 = inlined_call_operand.hbm [shape: f32[2,32,256], index: 1, kind: input, shape index: {}]
  %s2 = inlined_call_operand.vmem [shape: f32[32,64], index: 2, kind: input, shape index: {}]
  %s3 = inlined_call_operand.vmem [shape: f32[32,1], index: 3, kind: input, shape index: {}]
  %s4 = inlined_call_operand.vmem [shape: f32[32,32], index: 4, kind: input, shape index: {}]
  %s5 = inlined_call_operand.vmem [shape: f32[32,1], index: 5, kind: input, shape index: {}]
  %s6 = inlined_call_operand.hbm [shape: f32[2,32,256], index: 6, kind: output, shape index: {}]
  %s7 = sld [smem:[#allocation0]]
  $region65: #{tpu_custom_call.1} parent=0
    _
  %s9 = ssub.s32 1, %s7
  %s10 = scalar_select 0, %s9, %s7
  $region1: #{tpu_custom_call.1} parent=0
    #allocation2 [shape = 'u8[65536]{0}', space=vmem, size = 0x10000, scoped, tag = 'input window, operand 0']
    #allocation3 [shape = 's32[2]{0}', space=sflag, size = 0x8, scoped, tag = 'scoped memory for tpu_custom_call.1']
    #allocation4 [shape = 's32[2]{0}', space=sflag, size = 0x8, scoped, tag = 'scoped memory for tpu_custom_call.1']
    #allocation5 [shape = 'u8[65536]{0}', space=vmem, size = 0x10000, scoped, tag = 'input window, operand 1']
    #allocation6 [shape = 's32[2]{0}', space=sflag, size = 0x8, scoped, tag = 'scoped memory for tpu_custom_call.1']
    #allocation7 [shape = 'u8[65536]{0}', space=vmem, size = 0x10000, scoped, tag = 'output window, operand 0']
    %11 = vsyncpa [#allocation3], 0
    %s12 = scalar_lea.sflag [#allocation3], 1
    %13 = vsyncpa %s12, 0
    %14 = vsyncpa [#allocation6], 0
    %s15 = scalar_lea.sflag [#allocation6], 1
    %16 = vsyncpa %s15, 0
    %17 = vsyncpa [#allocation4], 0
    %s18 = scalar_lea.sflag [#allocation4], 1
    %19 = vsyncpa %s18, 0
    loop: start=0, step=1, limit=4
    $region2: #{tpu_custom_call.1} parent=1 // loop_pre_header
      _
    $region3: #{tpu_custom_call.1} parent=1 // loop_header
      %s21 = sphi 0, %s25
      %p22 = scmp.ge.s32.totalorder %s21, 4
      %s31 = sphi 0, %s33
      %s34 = sphi 0, %s31
      %s35 = sphi 0, %s34
      %s51 = sphi 0, %s35
      %s57 = sphi 0, %s59
      %s60 = sphi 0, %s57
      %s61 = sphi 0, %s60
      %s77 = sphi 0, %s61
      %s81 = sphi 0, %s81
      %s83 = sphi 0, %s81
      %s84 = sphi 0, %s83
      %s98 = sphi 0, %s84
      %s102 = sphi 0, %s102
      %s104 = sphi 0, %s102
      %s105 = sphi 0, %s104
      %s119 = sphi 0, %s105
      %s123 = sphi 0, %s123
      %s125 = sphi 0, %s123
      %s126 = sphi 0, %s125
      %s140 = sphi 0, %s126
      %s144 = sphi 0, %s144
      %s146 = sphi 0, %s144
      %s147 = sphi 0, %s146
      %s161 = sphi 0, %s147
      %s167 = sphi 0, %s169
      %s170 = sphi 0, %s167
      %s171 = sphi 0, %s170
      %s187 = sphi 0, %s171
    $region4: #{tpu_custom_call.1} parent=1 // loop_header_branch
      %24 = sbr.rel (%p22) target = $region8
    $region5: #{tpu_custom_call.1} parent=1 // loop_body
      %s26 = ssub.s32 %s21, 1
      %s27 = ssub.s32 %s21, 2
      %s28 = sadd.s32 %s21, 1
      %s29 = ssub.s32 %s21, %s28
      %p30 = scmp.eq.s32.totalorder %s29, 0
      %s32 = sadd.s32 %s31, 1
      %s33 = scalar_select %p30, %s31, %s32
      %p36 = pneg %p30
      %p37 = scmp.eq.s32.totalorder %s21, 1
      %p38 = por %p36, %p37
      %p39 = scmp.ne.s32.totalorder %s31, %s34
      %p40 = scmp.eq.s32.totalorder %s21, 0
      %p41 = por %p39, %p40
      %p42 = scmp.ne.s32.totalorder %s31, %s34
      %p43 = scmp.eq.s32.totalorder %s26, 1
      %p44 = por %p42, %p43
      %p45 = scmp.ne.s32.totalorder %s34, %s35
      %p46 = scmp.eq.s32.totalorder %s26, 0
      %p47 = por %p45, %p46
      %p48 = scmp.ne.s32.totalorder %s34, %s35
      %p49 = scmp.eq.s32.totalorder %s27, 1
      %p50 = por %p48, %p49
      %p52 = scmp.ne.s32.totalorder %s35, %s51
      %p53 = scmp.eq.s32.totalorder %s27, 0
      %p54 = por %p52, %p53
      %s55 = ssub.s32 %s21, %s28
      %p56 = scmp.eq.s32.totalorder %s55, 0
      %s58 = sadd.s32 %s57, 1
      %s59 = scalar_select %p56, %s57, %s58
      %p62 = pneg %p56
      %p63 = scmp.eq.s32.totalorder %s21, 1
      %p64 = por %p62, %p63
      %p65 = scmp.ne.s32.totalorder %s57, %s60
      %p66 = scmp.eq.s32.totalorder %s21, 0
      %p67 = por %p65, %p66
      %p68 = scmp.ne.s32.totalorder %s57, %s60
      %p69 = scmp.eq.s32.totalorder %s26, 1
      %p70 = por %p68, %p69
      %p71 = scmp.ne.s32.totalorder %s60, %s61
      %p72 = scmp.eq.s32.totalorder %s26, 0
      %p73 = por %p71, %p72
      %p74 = scmp.ne.s32.totalorder %s60, %s61
      %p75 = scmp.eq.s32.totalorder %s27, 1
      %p76 = por %p74, %p75
      %p78 = scmp.ne.s32.totalorder %s61, %s77
      %p79 = scmp.eq.s32.totalorder %s27, 0
      %p80 = por %p78, %p79
      %s82 = sadd.s32 %s81, 1
      %p85 = scmp.eq.s32.totalorder %s21, 1
      %p86 = scmp.ne.s32.totalorder %s81, %s83
      %p87 = scmp.eq.s32.totalorder %s21, 0
      %p88 = por %p86, %p87
      %p89 = scmp.ne.s32.totalorder %s81, %s83
      %p90 = scmp.eq.s32.totalorder %s26, 1
      %p91 = por %p89, %p90
      %p92 = scmp.ne.s32.totalorder %s83, %s84
      %p93 = scmp.eq.s32.totalorder %s26, 0
      %p94 = por %p92, %p93
      %p95 = scmp.ne.s32.totalorder %s83, %s84
      %p96 = scmp.eq.s32.totalorder %s27, 1
      %p97 = por %p95, %p96
      %p99 = scmp.ne.s32.totalorder %s84, %s98
      %p100 = scmp.eq.s32.totalorder %s27, 0
      %p101 = por %p99, %p100
      %s103 = sadd.s32 %s102, 1
      %p106 = scmp.eq.s32.totalorder %s21, 1
      %p107 = scmp.ne.s32.totalorder %s102, %s104
      %p108 = scmp.eq.s32.totalorder %s21, 0
      %p109 = por %p107, %p108
      %p110 = scmp.ne.s32.totalorder %s102, %s104
      %p111 = scmp.eq.s32.totalorder %s26, 1
      %p112 = por %p110, %p111
      %p113 = scmp.ne.s32.totalorder %s104, %s105
      %p114 = scmp.eq.s32.totalorder %s26, 0
      %p115 = por %p113, %p114
      %p116 = scmp.ne.s32.totalorder %s104, %s105
      %p117 = scmp.eq.s32.totalorder %s27, 1
      %p118 = por %p116, %p117
      %p120 = scmp.ne.s32.totalorder %s105, %s119
      %p121 = scmp.eq.s32.totalorder %s27, 0
      %p122 = por %p120, %p121
      %s124 = sadd.s32 %s123, 1
      %p127 = scmp.eq.s32.totalorder %s21, 1
      %p128 = scmp.ne.s32.totalorder %s123, %s125
      %p129 = scmp.eq.s32.totalorder %s21, 0
      %p130 = por %p128, %p129
      %p131 = scmp.ne.s32.totalorder %s123, %s125
      %p132 = scmp.eq.s32.totalorder %s26, 1
      %p133 = por %p131, %p132
      %p134 = scmp.ne.s32.totalorder %s125, %s126
      %p135 = scmp.eq.s32.totalorder %s26, 0
      %p136 = por %p134, %p135
      %p137 = scmp.ne.s32.totalorder %s125, %s126
      %p138 = scmp.eq.s32.totalorder %s27, 1
      %p139 = por %p137, %p138
      %p141 = scmp.ne.s32.totalorder %s126, %s140
      %p142 = scmp.eq.s32.totalorder %s27, 0
      %p143 = por %p141, %p142
      %s145 = sadd.s32 %s144, 1
      %p148 = scmp.eq.s32.totalorder %s21, 1
      %p149 = scmp.ne.s32.totalorder %s144, %s146
      %p150 = scmp.eq.s32.totalorder %s21, 0
      %p151 = por %p149, %p150
      %p152 = scmp.ne.s32.totalorder %s144, %s146
      %p153 = scmp.eq.s32.totalorder %s26, 1
      %p154 = por %p152, %p153
      %p155 = scmp.ne.s32.totalorder %s146, %s147
      %p156 = scmp.eq.s32.totalorder %s26, 0
      %p157 = por %p155, %p156
      %p158 = scmp.ne.s32.totalorder %s146, %s147
      %p159 = scmp.eq.s32.totalorder %s27, 1
      %p160 = por %p158, %p159
      %p162 = scmp.ne.s32.totalorder %s147, %s161
      %p163 = scmp.eq.s32.totalorder %s27, 0
      %p164 = por %p162, %p163
      %s165 = ssub.s32 %s21, %s28
      %p166 = scmp.eq.s32.totalorder %s165, 0
      %s168 = sadd.s32 %s167, 1
      %s169 = scalar_select %p166, %s167, %s168
      %p172 = pneg %p166
      %p173 = scmp.eq.s32.totalorder %s21, 1
      %p174 = por %p172, %p173
      %p175 = scmp.ne.s32.totalorder %s167, %s170
      %p176 = scmp.eq.s32.totalorder %s21, 0
      %p177 = por %p175, %p176
      %p178 = scmp.ne.s32.totalorder %s167, %s170
      %p179 = scmp.eq.s32.totalorder %s26, 1
      %p180 = por %p178, %p179
      %p181 = scmp.ne.s32.totalorder %s170, %s171
      %p182 = scmp.eq.s32.totalorder %s26, 0
      %p183 = por %p181, %p182
      %p184 = scmp.ne.s32.totalorder %s170, %s171
      %p185 = scmp.eq.s32.totalorder %s27, 1
      %p186 = por %p184, %p185
      %p188 = scmp.ne.s32.totalorder %s171, %s187
      %p189 = scmp.eq.s32.totalorder %s27, 0
      %p190 = por %p188, %p189
      %p191 = scmp.le.s32.totalorder 1, %s21
      %p192 = scmp.lt.s32.totalorder %s21, 3
      %p193 = pnand %p191, %p192
      %p194 = pneg %p193
      // Predicated region
      $region9: #{tpu_custom_call.1} parent=5 // pred_check
        _
      $region10: #{tpu_custom_call.1} parent=5 // pred_check_branch
        %196 = sbr.rel (%p193) target = $region12
      $region11: #{tpu_custom_call.1} parent=5 // pred_region
        %s197 = ssub.s32 %s21, 1
        // Predicated region
        $region13: #{tpu_custom_call.1} parent=11 // pred_check
          %p198 = pneg %p94
        $region14: #{tpu_custom_call.1} parent=11 // pred_check_branch
          %200 = sbr.rel (%p198) target = $region16
        $region15: #{tpu_custom_call.1} parent=11 // pred_region
          _
        $region16: #{tpu_custom_call.1} parent=11 // pred_fallthru
          _
        // Predicated region
        $region17: #{tpu_custom_call.1} parent=11 // pred_check
          %p201 = pneg %p115
        $region18: #{tpu_custom_call.1} parent=11 // pred_check_branch
          %203 = sbr.rel (%p201) target = $region20
        $region19: #{tpu_custom_call.1} parent=11 // pred_region
          _
        $region20: #{tpu_custom_call.1} parent=11 // pred_fallthru
          _
        // Predicated region
        $region21: #{tpu_custom_call.1} parent=11 // pred_check
          %p204 = pneg %p136
        $region22: #{tpu_custom_call.1} parent=11 // pred_check_branch
          %206 = sbr.rel (%p204) target = $region24
        $region23: #{tpu_custom_call.1} parent=11 // pred_region
          _
        $region24: #{tpu_custom_call.1} parent=11 // pred_fallthru
          _
        // Predicated region
        $region25: #{tpu_custom_call.1} parent=11 // pred_check
          %p207 = pneg %p157
        $region26: #{tpu_custom_call.1} parent=11 // pred_check_branch
          %209 = sbr.rel (%p207) target = $region28
        $region27: #{tpu_custom_call.1} parent=11 // pred_region
          _
        $region28: #{tpu_custom_call.1} parent=11 // pred_fallthru
          _
      $region12: #{tpu_custom_call.1} parent=5 // pred_fallthru
        _
      %p210 = scmp.lt.s32.totalorder %s21, 2
      // Predicated region
      $region29: #{tpu_custom_call.1} parent=5 // pred_check
        %p211 = pneg %p210
      $region30: #{tpu_custom_call.1} parent=5 // pred_check_branch
        %213 = sbr.rel (%p211) target = $region32
      $region31: #{tpu_custom_call.1} parent=5 // pred_region
        // Predicated region
        $region33: #{tpu_custom_call.1} parent=31 // pred_check
          %p214 = pneg %p41
        $region34: #{tpu_custom_call.1} parent=31 // pred_check_branch
          %216 = sbr.rel (%p214) target = $region36
        $region35: #{tpu_custom_call.1} parent=31 // pred_region
          %s217 = sand.u32 %s31, 1
          %s218 = scalar_lea.sflag [#allocation3], %s217
          %s219 = sand.u32 %s31, 1
          %s220 = smul.addr %s219, 64
          %s221 = scalar_lea.vmem [#allocation2], %s220
          %223 = vsyncadd %s218, 0
          %s224 = smul.addr %s21, 8
          %s225 = smul.addr %s224, 8
          %s226 = scalar_lea.hbm %s0, %s225
          %s227 = sshll.u32 %s226, 4
          %s228 = int_to_ptr.hbm [resolvable:$true] %s227
          %s229 = sshll.u32 %s221, 4
          %s230 = int_to_ptr.vmem [resolvable:$true] %s229
          %235 = dma.hbm_to_vmem [thread:$0]  %s228, 1024, %s230, %s218, 256, 256, 16
        $region36: #{tpu_custom_call.1} parent=31 // pred_fallthru
          _
        // Predicated region
        $region37: #{tpu_custom_call.1} parent=31 // pred_check
          %p236 = pneg %p67
        $region38: #{tpu_custom_call.1} parent=31 // pred_check_branch
          %238 = sbr.rel (%p236) target = $region40
        $region39: #{tpu_custom_call.1} parent=31 // pred_region
          %s239 = sand.u32 %s57, 1
          %s240 = scalar_lea.sflag [#allocation6], %s239
          %s241 = sand.u32 %s57, 1
          %s242 = smul.addr %s241, 64
          %s243 = scalar_lea.vmem [#allocation5], %s242
          %245 = vsyncadd %s240, 0
          %s246 = smul.addr %s21, 8
          %s247 = smul.addr %s246, 8
          %s248 = scalar_lea.hbm %s1, %s247
          %s249 = sshll.u32 %s248, 4
          %s250 = int_to_ptr.hbm [resolvable:$true] %s249
          %s251 = sshll.u32 %s243, 4
          %s252 = int_to_ptr.vmem [resolvable:$true] %s251
          %257 = dma.hbm_to_vmem [thread:$0]  %s250, 1024, %s252, %s240, 256, 256, 16
        $region40: #{tpu_custom_call.1} parent=31 // pred_fallthru
          _
      $region32: #{tpu_custom_call.1} parent=5 // pred_fallthru
        _
      %p258 = scmp.le.s32.totalorder 1, %s21
      %p259 = scmp.lt.s32.totalorder %s21, 3
      %p260 = pnand %p258, %p259
      %p261 = pneg %p260
      // Predicated region
      $region41: #{tpu_custom_call.1} parent=5 // pred_check
        _
      $region42: #{tpu_custom_call.1} parent=5 // pred_check_branch
        %263 = sbr.rel (%p260) target = $region44
      $region43: #{tpu_custom_call.1} parent=5 // pred_region
        %s264 = ssub.s32 %s21, 1
        %s265 = sand.u32 %s34, 1
        %s266 = scalar_lea.sflag [#allocation3], %s265
        %s267 = sand.u32 %s34, 1
        %s268 = smul.addr %s267, 64
        %s269 = scalar_lea.vmem [#allocation2], %s268
        // Predicated region
        $region45: #{tpu_custom_call.1} parent=43 // pred_check
          %p270 = pneg %p47
        $region46: #{tpu_custom_call.1} parent=43 // pred_check_branch
          %272 = sbr.rel (%p270) target = $region48
        $region47: #{tpu_custom_call.1} parent=43 // pred_region
          %274 = dma.done %s266, 1024
        $region48: #{tpu_custom_call.1} parent=43 // pred_fallthru
          _
        %s275 = sand.u32 %s60, 1
        %s276 = scalar_lea.sflag [#allocation6], %s275
        %s277 = sand.u32 %s60, 1
        %s278 = smul.addr %s277, 64
        %s279 = scalar_lea.vmem [#allocation5], %s278
        // Predicated region
        $region49: #{tpu_custom_call.1} parent=43 // pred_check
          %p280 = pneg %p73
        $region50: #{tpu_custom_call.1} parent=43 // pred_check_branch
          %282 = sbr.rel (%p280) target = $region52
        $region51: #{tpu_custom_call.1} parent=43 // pred_region
          %284 = dma.done %s276, 1024
        $region52: #{tpu_custom_call.1} parent=43 // pred_fallthru
          _
        %s285 = sand.u32 %s34, 1
        %s286 = scalar_lea.sflag [#allocation3], %s285
        %s287 = sand.u32 %s34, 1
        %s288 = smul.addr %s287, 64
        %s289 = scalar_lea.vmem [#allocation2], %s288
        %p290 = pneg %p47
        %p291 = pneg %p44
        %s292 = sand.u32 %s60, 1
        %s293 = scalar_lea.sflag [#allocation6], %s292
        %s294 = sand.u32 %s60, 1
        %s295 = smul.addr %s294, 64
        %s296 = scalar_lea.vmem [#allocation5], %s295
        %p297 = pneg %p73
        %p298 = pneg %p70
        %p299 = pneg %p94
        %p300 = pneg %p91
        %p301 = pneg %p115
        %p302 = pneg %p112
        %p303 = pneg %p136
        %p304 = pneg %p133
        %p305 = pneg %p157
        %p306 = pneg %p154
        %p307 = pneg %p183
        %p308 = pneg %p180
        %s309 = sand.u32 %s170, 1
        %s310 = scalar_lea.sflag [#allocation4], %s309
        %s311 = sand.u32 %s170, 1
        %s312 = smul.addr %s311, 64
        %s313 = scalar_lea.vmem [#allocation7], %s312
        %v314 = vld [vmem:[%s269] sm:$0xff]
        %v315 = vld [vmem:[%s269 + $0x8] sm:$0xff]
        %v316 = vld [vmem:[%s269 + $0x10] sm:$0xff]
        %v317 = vld [vmem:[%s269 + $0x18] sm:$0xff]
        %v318 = vld [vmem:[%s269 + $0x20] sm:$0xff]
        %v319 = vld [vmem:[%s269 + $0x28] sm:$0xff]
        %v320 = vld [vmem:[%s269 + $0x30] sm:$0xff]
        %v321 = vld [vmem:[%s269 + $0x38] sm:$0xff]
        %v322 = vadd.f32 %v314, %v315
        %323 = vadd.xlane.f32.xlu0 %v322
        %v324 = vpop.xlane.xlu0 %323
        %v325 = vadd.f32 %v316, %v317
        %326 = vadd.xlane.f32.xlu0 %v325
        %v327 = vpop.xlane.xlu0 %326
        %v328 = vadd.f32 %v318, %v319
        %329 = vadd.xlane.f32.xlu0 %v328
        %v330 = vpop.xlane.xlu0 %329
        %v331 = vadd.f32 %v320, %v321
        %332 = vadd.xlane.f32.xlu0 %v331
        %v333 = vpop.xlane.xlu0 %332
        %v334 = vrcp.pop 256.0
        %v335 = vmul.f32 256.0, %v334
        %v336 = vsub.f32 1.0, %v335
        %v337 = vmul.f32 %v334, %v336
        %v338 = vadd.f32 %v334, %v337
        %vm339 = vweird.f32 %v334
        %v340 = vsel %vm339, %v334, %v338
        %v341 = vmul.f32 %v324, %v340
        %v342 = vmul.f32 %v327, %v340
        %v343 = vmul.f32 %v330, %v340
        %v344 = vmul.f32 %v333, %v340
        %v345 = vld [vmem:[%s279] sm:$0xff]
        %v346 = vld [vmem:[%s279 + $0x8] sm:$0xff]
        %v347 = vld [vmem:[%s279 + $0x10] sm:$0xff]
        %v348 = vld [vmem:[%s279 + $0x18] sm:$0xff]
        %v349 = vld [vmem:[%s279 + $0x20] sm:$0xff]
        %v350 = vld [vmem:[%s279 + $0x28] sm:$0xff]
        %v351 = vld [vmem:[%s279 + $0x30] sm:$0xff]
        %v352 = vld [vmem:[%s279 + $0x38] sm:$0xff]
        %v353 = vadd.f32 %v345, %v346
        %354 = vadd.xlane.f32.xlu0 %v353
        %v355 = vpop.xlane.xlu0 %354
        %v356 = vadd.f32 %v347, %v348
        %357 = vadd.xlane.f32.xlu0 %v356
        %v358 = vpop.xlane.xlu0 %357
        %v359 = vadd.f32 %v349, %v350
        %360 = vadd.xlane.f32.xlu0 %v359
        %v361 = vpop.xlane.xlu0 %360
        %v362 = vadd.f32 %v351, %v352
        %363 = vadd.xlane.f32.xlu0 %v362
        %v364 = vpop.xlane.xlu0 %363
        %v365 = vmul.f32 %v355, %v340
        %v366 = vmul.f32 %v358, %v340
        %v367 = vmul.f32 %v361, %v340
        %v368 = vmul.f32 %v364, %v340
        %v369 = vld [vmem:[%s2] sm:$0xff]
        %v370 = vld [vmem:[%s2 + $0x8] sm:$0xff]
        %v371 = vld [vmem:[%s2 + $0x10] sm:$0xff]
        %v372 = vld [vmem:[%s2 + $0x18] sm:$0xff]
        %v373 = vld [vmem:[%s3] sm:$0xff]
        %v374 = vld [vmem:[%s3 + $0x8] sm:$0xff]
        %v375 = vld [vmem:[%s3 + $0x10] sm:$0xff]
        %v376 = vld [vmem:[%s3 + $0x18] sm:$0xff]
        %vm377 = vcmask 523264
        %v379 = vsel %vm377, %v369, 0
        %v382 = vsel %vm377, %v370, 0
        %v385 = vsel %vm377, %v371, 0
        %v388 = vsel %vm377, %v372, 0
        %390 = vmatpush.msra.mxu0 0.0
        %391 = vmatpush.msra.mxu0 0.0
        %392 = vmatpush.msra.mxu0 0.0
        %393 = vmatpush.msra.mxu0 0.0
        %394 = vmatpush.msra.mxu0 0.0
        %395 = vmatpush.msra.mxu0 0.0
        %396 = vmatpush.msra.mxu0 0.0
        %397 = vmatpush.msra.mxu0 0.0
        %398 = vmatpush.msra.mxu0 %v368
        %399 = vmatpush.msra.mxu0 %v367
        %400 = vmatpush.msra.mxu0 %v366
        %401 = vmatpush.msra.mxu0 %v365
        %402 = vmatpush.msra.mxu0 %v344
        %403 = vmatpush.msra.mxu0 %v343
        %404 = vmatpush.msra.mxu0 %v342
        %405 = vmatpush.msra.mxu0 %v341
        %406 = vmatmul.f32.gmra.mxu0 %v379
        %v407 = vpop.f32.mrf.mxu0
        %v408 = vadd.f32 %v373, %v407
        %409 = vmatmul.f32.gmra.mxu0 %v382
        %v410 = vpop.f32.mrf.mxu0
        %v411 = vadd.f32 %v374, %v410
        %412 = vmatmul.f32.gmra.mxu0 %v385
        %v413 = vpop.f32.mrf.mxu0
        %v414 = vadd.f32 %v375, %v413
        %415 = vmatmul.f32.gmra.mxu0 %v388
        %v416 = vpop.f32.mrf.mxu0
        %v417 = vadd.f32 %v376, %v416
        %418 = vdwg.mxu0
        %v419 = vmax.f32 %v408, 0.0
        %v420 = vmax.f32 %v411, 0.0
        %v421 = vmax.f32 %v414, 0.0
        %v422 = vmax.f32 %v417, 0.0
        %v423 = vld [vmem:[%s4] sm:$0xff]
        %v424 = vld [vmem:[%s4 + $0x8] sm:$0xff]
        %v425 = vld [vmem:[%s4 + $0x10] sm:$0xff]
        %v426 = vld [vmem:[%s4 + $0x18] sm:$0xff]
        %v427 = vld [vmem:[%s5] sm:$0xff]
        %v428 = vld [vmem:[%s5 + $0x8] sm:$0xff]
        %v429 = vld [vmem:[%s5 + $0x10] sm:$0xff]
        %v430 = vld [vmem:[%s5 + $0x18] sm:$0xff]
        %vm431 = vcmask 261120
        %v433 = vsel %vm431, %v423, 0
        %v436 = vsel %vm431, %v424, 0
        %v439 = vsel %vm431, %v425, 0
        %v442 = vsel %vm431, %v426, 0
        %444 = vmatpush.msra.mxu0 0.0
        %445 = vmatpush.msra.mxu0 0.0
        %446 = vmatpush.msra.mxu0 0.0
        %447 = vmatpush.msra.mxu0 0.0
        %448 = vmatpush.msra.mxu0 0.0
        %449 = vmatpush.msra.mxu0 0.0
        %450 = vmatpush.msra.mxu0 0.0
        %451 = vmatpush.msra.mxu0 0.0
        %452 = vmatpush.msra.mxu0 0.0
        %453 = vmatpush.msra.mxu0 0.0
        %454 = vmatpush.msra.mxu0 0.0
        %455 = vmatpush.msra.mxu0 0.0
        %456 = vmatpush.msra.mxu0 %v422
        %457 = vmatpush.msra.mxu0 %v421
        %458 = vmatpush.msra.mxu0 %v420
        %459 = vmatpush.msra.mxu0 %v419
        %460 = vmatmul.f32.gmra.mxu0 %v433
        %v461 = vpop.f32.mrf.mxu0
        %v462 = vadd.f32 %v427, %v461
        %463 = vmatmul.f32.gmra.mxu0 %v436
        %v464 = vpop.f32.mrf.mxu0
        %v465 = vadd.f32 %v428, %v464
        %466 = vmatmul.f32.gmra.mxu0 %v439
        %v467 = vpop.f32.mrf.mxu0
        %v468 = vadd.f32 %v429, %v467
        %469 = vmatmul.f32.gmra.mxu0 %v442
        %v470 = vpop.f32.mrf.mxu0
        %v471 = vadd.f32 %v430, %v470
        %472 = vdwg.mxu0
        %v473 = vxor.u32 %v462, 2147483648
        %v474 = vxor.u32 %v465, 2147483648
        %v475 = vxor.u32 %v468, 2147483648
        %v476 = vxor.u32 %v471, 2147483648
        %v477 = vmul.f32 %v473, 1.442695
        %v478 = vpow.pop %v477
        %v479 = vmul.f32 %v474, 1.442695
        %v480 = vpow.pop %v479
        %v481 = vmul.f32 %v475, 1.442695
        %v482 = vpow.pop %v481
        %v483 = vmul.f32 %v476, 1.442695
        %v484 = vpow.pop %v483
        %v485 = vadd.f32 %v478, 1.0
        %v486 = vadd.f32 %v480, 1.0
        %v487 = vadd.f32 %v482, 1.0
        %v488 = vadd.f32 %v484, 1.0
        %v489 = vrcp.pop %v485
        %v490 = vmul.f32 %v485, %v489
        %v491 = vsub.f32 1.0, %v490
        %v492 = vmul.f32 %v489, %v491
        %v493 = vadd.f32 %v489, %v492
        %vm494 = vweird.f32 %v485
        %vm495 = vweird.f32 %v489
        %vm496 = vmor %vm494, %vm495
        %v497 = vsel %vm496, %v489, %v493
        %v498 = vand.u32 2147483647, %v485
        %vm499 = vcmp.eq.f32.partialorder %v498, 8.507059e+37
        %v500 = vand.u32 %v485, 2147483648
        %v501 = vor.u32 1.1754944e-38, %v500
        %v502 = vsel %vm499, %v501, %v497
        %v503 = vmul.f32 1.0, %v502
        %v504 = vrcp.pop %v486
        %v505 = vmul.f32 %v486, %v504
        %v506 = vsub.f32 1.0, %v505
        %v507 = vmul.f32 %v504, %v506
        %v508 = vadd.f32 %v504, %v507
        %vm509 = vweird.f32 %v486
        %vm510 = vweird.f32 %v504
        %vm511 = vmor %vm509, %vm510
        %v512 = vsel %vm511, %v504, %v508
        %v513 = vand.u32 2147483647, %v486
        %vm514 = vcmp.eq.f32.partialorder %v513, 8.507059e+37
        %v515 = vand.u32 %v486, 2147483648
        %v516 = vor.u32 1.1754944e-38, %v515
        %v517 = vsel %vm514, %v516, %v512
        %v518 = vmul.f32 1.0, %v517
        %v519 = vrcp.pop %v487
        %v520 = vmul.f32 %v487, %v519
        %v521 = vsub.f32 1.0, %v520
        %v522 = vmul.f32 %v519, %v521
        %v523 = vadd.f32 %v519, %v522
        %vm524 = vweird.f32 %v487
        %vm525 = vweird.f32 %v519
        %vm526 = vmor %vm524, %vm525
        %v527 = vsel %vm526, %v519, %v523
        %v528 = vand.u32 2147483647, %v487
        %vm529 = vcmp.eq.f32.partialorder %v528, 8.507059e+37
        %v530 = vand.u32 %v487, 2147483648
        %v531 = vor.u32 1.1754944e-38, %v530
        %v532 = vsel %vm529, %v531, %v527
        %v533 = vmul.f32 1.0, %v532
        %v534 = vrcp.pop %v488
        %v535 = vmul.f32 %v488, %v534
        %v536 = vsub.f32 1.0, %v535
        %v537 = vmul.f32 %v534, %v536
        %v538 = vadd.f32 %v534, %v537
        %vm539 = vweird.f32 %v488
        %vm540 = vweird.f32 %v534
        %vm541 = vmor %vm539, %vm540
        %v542 = vsel %vm541, %v534, %v538
        %v543 = vand.u32 2147483647, %v488
        %vm544 = vcmp.eq.f32.partialorder %v543, 8.507059e+37
        %v545 = vand.u32 %v488, 2147483648
        %v546 = vor.u32 1.1754944e-38, %v545
        %v547 = vsel %vm544, %v546, %v542
        %v548 = vmul.f32 1.0, %v547
        %550 = vset.pattern.permute.xlu0 0
        %551 = vperm.xlu0 %550, %v503
        %v552 = vpop.permute.xlu0 %551
        %555 = vset.pattern.permute.xlu0 0
        %556 = vperm.xlu0 %555, %v518
        %v557 = vpop.permute.xlu0 %556
        %560 = vset.pattern.permute.xlu0 0
        %561 = vperm.xlu0 %560, %v533
        %v562 = vpop.permute.xlu0 %561
        %565 = vset.pattern.permute.xlu0 0
        %566 = vperm.xlu0 %565, %v548
        %v567 = vpop.permute.xlu0 %566
        %v569 = vmul.f32 %v345, %v552
        %v570 = vmul.f32 %v346, %v552
        %v571 = vmul.f32 %v347, %v557
        %v572 = vmul.f32 %v348, %v557
        %v573 = vmul.f32 %v349, %v562
        %v574 = vmul.f32 %v350, %v562
        %v575 = vmul.f32 %v351, %v567
        %v576 = vmul.f32 %v352, %v567
        %v577 = vadd.f32 %v569, %v314
        %v578 = vadd.f32 %v570, %v315
        %v579 = vadd.f32 %v571, %v316
        %v580 = vadd.f32 %v572, %v317
        %v581 = vadd.f32 %v573, %v318
        %v582 = vadd.f32 %v574, %v319
        %v583 = vadd.f32 %v575, %v320
        %v584 = vadd.f32 %v576, %v321
        %585 = vst [vmem:[%s313] sm:$0xff] %v577
        %586 = vst [vmem:[%s313 + $0x8] sm:$0xff] %v578
        %587 = vst [vmem:[%s313 + $0x10] sm:$0xff] %v579
        %588 = vst [vmem:[%s313 + $0x18] sm:$0xff] %v580
        %589 = vst [vmem:[%s313 + $0x20] sm:$0xff] %v581
        %590 = vst [vmem:[%s313 + $0x28] sm:$0xff] %v582
        %591 = vst [vmem:[%s313 + $0x30] sm:$0xff] %v583
        %592 = vst [vmem:[%s313 + $0x38] sm:$0xff] %v584
        %s593 = sand.u32 %s170, 1
        %s594 = scalar_lea.sflag [#allocation4], %s593
        %s595 = sand.u32 %s170, 1
        %s596 = smul.addr %s595, 64
        %s597 = scalar_lea.vmem [#allocation7], %s596
        // Predicated region
        $region53: #{tpu_custom_call.1} parent=43 // pred_check
          %p598 = pneg %p180
        $region54: #{tpu_custom_call.1} parent=43 // pred_check_branch
          %600 = sbr.rel (%p598) target = $region56
        $region55: #{tpu_custom_call.1} parent=43 // pred_region
          %602 = vsyncadd %s594, 0
          %s603 = smul.addr %s26, 8
          %s604 = smul.addr %s603, 8
          %s605 = scalar_lea.hbm %s6, %s604
          %s606 = sshll.u32 %s597, 4
          %s607 = int_to_ptr.vmem [resolvable:$true] %s606
          %s608 = sshll.u32 %s605, 4
          %s609 = int_to_ptr.hbm [resolvable:$true] %s608
          %614 = dma.vmem_to_hbm [thread:$0]  %s607, 1024, %s609, %s594, 256, 256, 16
        $region56: #{tpu_custom_call.1} parent=43 // pred_fallthru
          _
      $region44: #{tpu_custom_call.1} parent=5 // pred_fallthru
        _
      %p615 = scmp.le.s32.totalorder 2, %s21
      // Predicated region
      $region57: #{tpu_custom_call.1} parent=5 // pred_check
        %p616 = pneg %p615
      $region58: #{tpu_custom_call.1} parent=5 // pred_check_branch
        %618 = sbr.rel (%p616) target = $region60
      $region59: #{tpu_custom_call.1} parent=5 // pred_region
        %s619 = ssub.s32 %s21, 2
        // Predicated region
        $region61: #{tpu_custom_call.1} parent=59 // pred_check
          %p620 = pneg %p186
        $region62: #{tpu_custom_call.1} parent=59 // pred_check_branch
          %622 = sbr.rel (%p620) target = $region64
        $region63: #{tpu_custom_call.1} parent=59 // pred_region
          %s623 = sand.u32 %s171, 1
          %s624 = scalar_lea.sflag [#allocation4], %s623
          %s625 = sand.u32 %s171, 1
          %s626 = smul.addr %s625, 64
          %s627 = scalar_lea.vmem [#allocation7], %s626
          %629 = dma.done %s624, 1024
        $region64: #{tpu_custom_call.1} parent=59 // pred_fallthru
          _
      $region60: #{tpu_custom_call.1} parent=5 // pred_fallthru
        _
    $region6: #{tpu_custom_call.1} parent=1 // loop_footer
      %s25 = sadd.s32 1, %s21
    $region7: #{tpu_custom_call.1} parent=1 // loop_footer_branch
      %20 = sbr.rel target = $region3
    $region8: #{tpu_custom_call.1} parent=1 // loop_exit
      _
    %630 = vsyncpa [#allocation3], 1
    %s631 = scalar_lea.sflag [#allocation3], 1
    %632 = vsyncpa %s631, 1
    %633 = vsyncpa [#allocation6], 1
    %s634 = scalar_lea.sflag [#allocation6], 1
    %635 = vsyncpa %s634, 1
    %636 = vsyncpa [#allocation4], 1
    %s637 = scalar_lea.sflag [#allocation4], 1
    %638 = vsyncpa %s637, 1

</llo_original>
